<compile_context>
chip_gen: v7x
topology: tpu7x:2x2x1
jax: 0.10.0
libtpu: 0.0.40
codegen_flags: <defaults>
</compile_context>

<pallas_src>
import functools

import jax
import jax.numpy as jnp
from jax import lax
from jax.experimental import pallas as pl
from jax.experimental.pallas import tpu as pltpu


def _round_up(x, m):
    return (x + m - 1) // m * m


def _cdiv(a, b):
    return -(-a // b)


def _block_diag(tab, k):
    """k copies of `tab` on the diagonal: (k*V, k*E)."""
    v, e = tab.shape
    out = jnp.zeros((k * v, k * e), tab.dtype)
    for j in range(k):
        out = out.at[j * v:(j + 1) * v, j * e:(j + 1) * e].set(tab)
    return out


def _mlp_goal_encoder_kernel(goal_ref, cnt_bd_ref, val_bd_ref, w_ref, b_ref,
                             out_ref, *, k, vocab):
    tb = goal_ref.shape[0]             # batch tile (multiple of 8)
    kv = cnt_bd_ref.shape[0]           # k * vocab   (one-hot width)
    mxu_dt = cnt_bd_ref.dtype

    goal = goal_ref[...]               # (TB, 2k) int32, interleaved ids

    # Lane-dense one-hots: item j's id is offset by j*vocab so a single
    # block-diagonal matmul produces the item-major flat embeddings.
    iota = lax.broadcasted_iota(jnp.int32, (tb, kv), 1)
    oh_c = iota == goal[:, 0:1]
    oh_v = iota == goal[:, 1:2]
    for j in range(1, k):              # k is tiny & static -> unrolled
        oh_c = jnp.logical_or(oh_c, iota == goal[:, 2 * j:2 * j + 1] + j * vocab)
        oh_v = jnp.logical_or(oh_v, iota == goal[:, 2 * j + 1:2 * j + 2] + j * vocab)
    oh_c = oh_c.astype(mxu_dt)
    oh_v = oh_v.astype(mxu_dt)

    # Fused embedding "gathers": (TB, k*V) @ (k*V, k*E) on the MXU.
    cnt_flat = jnp.dot(oh_c, cnt_bd_ref[...], preferred_element_type=jnp.float32)
    val_flat = jnp.dot(oh_v, val_bd_ref[...], preferred_element_type=jnp.float32)

    # h = tanh(cnt_emb * val_emb)  (encoder applies Tanh BEFORE the Linear)
    h = jnp.tanh(cnt_flat * val_flat).astype(w_ref.dtype)        # (TB, k*E)

    # Single fused output projection: (TB, k*E) @ (k*E, n_pad) + bias.
    out = jnp.dot(h, w_ref[...], preferred_element_type=jnp.float32) + b_ref[...]
    out_ref[...] = out.astype(out_ref.dtype)


def mlp_goal_encoder_forward(goal, cnt_table, val_table, enc_w, enc_b, *,
                             max_batch_tile=1024, mxu_dtype=jnp.float32):
    """Pallas equivalent of MlpGoalEncoder.forward(goal).

    goal:      [B, 2k] integer ids (interleaved count/value ids)
    cnt_table: [V, E]  cnt_enc.weight
    val_table: [V, E]  val_enc.weight
    enc_w:     [k*E, nhid]  Linear weight already in (in, out) layout
    enc_b:     [nhid]       Linear bias
    returns    [B, nhid] float32
    """
    goal = goal.astype(jnp.int32)
    b, two_k = goal.shape
    k = two_k // 2
    vocab, emb = cnt_table.shape
    nhid = enc_w.shape[1]

    # Host-side block-diagonal embedding tables (tiny: (k*V, k*E)).
    cnt_bd = _block_diag(cnt_table.astype(mxu_dtype), k)
    val_bd = _block_diag(val_table.astype(mxu_dtype), k)

    # Lane-dense output: pad hidden dim to a multiple of 128 (bias pad = 0 so
    # the slice-back is exact -> unmasked vector stores).
    n_pad = _round_up(nhid, 128)
    w = enc_w.astype(mxu_dtype)
    bias = enc_b.astype(jnp.float32)
    if n_pad != nhid:
        w = jnp.pad(w, ((0, 0), (0, n_pad - nhid)))
        bias = jnp.pad(bias, ((0, n_pad - nhid),))
    bias_row = bias.reshape(1, n_pad)

    # Adaptive batch tiling: even tiles (multiple of 8) so padding waste is
    # < 8 rows, and >= 2 grid steps when the batch allows it so both v7x
    # TensorCores get work via the "parallel" batch axis.
    n_tiles = max(1, _cdiv(b, max_batch_tile))
    if b >= 16:
        n_tiles = max(n_tiles, 2)
    tb = _round_up(_cdiv(b, n_tiles), 8)
    b_pad = _round_up(b, tb)
    if b_pad != b:
        # pad ids = 0 (a valid vocab index); padded rows are sliced off below.
        goal = jnp.pad(goal, ((0, b_pad - b), (0, 0)))
    grid = (b_pad // tb,)

    kernel = functools.partial(_mlp_goal_encoder_kernel, k=k, vocab=vocab)

    out = pl.pallas_call(
        kernel,
        out_shape=jax.ShapeDtypeStruct((b_pad, n_pad), jnp.float32),
        grid_spec=pltpu.PrefetchScalarGridSpec(
            num_scalar_prefetch=0,
            grid=grid,
            in_specs=[
                pl.BlockSpec((tb, 2 * k), lambda i: (i, 0)),            # goal ids
                pl.BlockSpec((k * vocab, k * emb), lambda i: (0, 0)),   # cnt blkdiag
                pl.BlockSpec((k * vocab, k * emb), lambda i: (0, 0)),   # val blkdiag
                pl.BlockSpec((k * emb, n_pad), lambda i: (0, 0)),       # Linear W
                pl.BlockSpec((1, n_pad), lambda i: (0, 0)),             # Linear b
            ],
            out_specs=pl.BlockSpec((tb, n_pad), lambda i: (i, 0)),
        ),
        compiler_params=pltpu.CompilerParams(
            dimension_semantics=("parallel",),   # rows independent -> shardable
        ),
    )(goal, cnt_bd, val_bd, w, bias_row)

    return out[:b, :nhid]


def _reference(goal, cnt_table, val_table, enc_w, enc_b):
    """Pure-JAX reference of the PyTorch forward."""
    b = goal.shape[0]
    cnt = goal[:, 0::2]
    val = goal[:, 1::2]
    h = cnt_table[cnt] * val_table[val]          # (B, k, E)
    h = h.reshape(b, -1)                         # (B, k*E), item-major like torch
    return jnp.tanh(h) @ enc_w + enc_b


if __name__ == "__main__":
    key = jax.random.PRNGKey(0)
    kg, kc, kv, kw = jax.random.split(key, 4)

    # Small shapes consistent with the module: k item pairs, small vocab.
    batch, k, nembed, nhid, vocab, init_range = 8, 3, 32, 64, 16, 0.1

    goal = jax.random.randint(kg, (batch, 2 * k), 0, vocab, dtype=jnp.int32)
    cnt_table = jax.random.uniform(kc, (vocab, nembed), jnp.float32,
                                   -init_range, init_range)
    val_table = jax.random.uniform(kv, (vocab, nembed), jnp.float32,
                                   -init_range, init_range)
    # nn.Linear(k*nembed, nhid): weight stored directly in (in, out) layout
    # (i.e. torch_weight.T); bias initialized to zero as in the module.
    enc_w = jax.random.uniform(kw, (k * nembed, nhid), jnp.float32,
                               -init_range, init_range)
    enc_b = jnp.zeros((nhid,), jnp.float32)

    out = mlp_goal_encoder_forward(goal, cnt_table, val_table, enc_w, enc_b)
    out = jax.block_until_ready(out)

    ref = _reference(goal, cnt_table, val_table, enc_w, enc_b)
    assert out.shape == (batch, nhid)
    assert jnp.allclose(out, ref, atol=1e-5, rtol=1e-5), \
        float(jnp.max(jnp.abs(out - ref)))

    # TODO(synk): torch's nn.Embedding raises on out-of-range ids; here an
    # invalid id silently yields a zero embedding row.
    print("KERNEL_OK")
</pallas_src>

<mosaic_0001>
module attributes {stable_mosaic.version = 11 : i64} {
  func.func @_mlp_goal_encoder_kernel(%arg0: i32, %arg1: memref<8x6xi32, #tpu.memory_space<vmem>>, %arg2: memref<48x96xf32, #tpu.memory_space<vmem>>, %arg3: memref<48x96xf32, #tpu.memory_space<vmem>>, %arg4: memref<96x128xf32, #tpu.memory_space<vmem>>, %arg5: memref<1x128xf32, #tpu.memory_space<vmem>>, %arg6: memref<8x128xf32, #tpu.memory_space<vmem>>) attributes {dimension_semantics = [#tpu.dimension_semantics<parallel>], iteration_bounds = array<i64: 1>, scalar_prefetch = 0 : i64, scratch_operands = 0 : i64, tpu.core_type = #tpu.core_type<tc>, window_params = [{transform_indices = @transform_0, window_bounds = array<i64: 8, 6>}, {pipeline_mode = #tpu.pipeline_mode<synchronous>, transform_indices = @transform_1, window_bounds = array<i64: 48, 96>}, {pipeline_mode = #tpu.pipeline_mode<synchronous>, transform_indices = @transform_2, window_bounds = array<i64: 48, 96>}, {pipeline_mode = #tpu.pipeline_mode<synchronous>, transform_indices = @transform_3, window_bounds = array<i64: 96, 128>}, {pipeline_mode = #tpu.pipeline_mode<synchronous>, transform_indices = @transform_4, window_bounds = array<i64: 1, 128>}, {transform_indices = @transform_5, window_bounds = array<i64: 8, 128>}]} {
    %c0 = arith.constant 0 : index
    %c0_0 = arith.constant 0 : index
    %0 = vector.load %arg1[%c0, %c0_0] : memref<8x6xi32, #tpu.memory_space<vmem>>, vector<8x6xi32>
    %1 = tpu.iota {dimensions = array<i32: 1>} : vector<8x48xi32>
    %2 = vector.extract_strided_slice %0 {offsets = [0, 0], sizes = [8, 1], strides = [1, 1]} : vector<8x6xi32> to vector<8x1xi32>
    %3 = vector.broadcast %2 : vector<8x1xi32> to vector<8x48xi32>
    %4 = arith.cmpi eq, %1, %3 : vector<8x48xi32>
    %5 = vector.extract_strided_slice %0 {offsets = [0, 1], sizes = [8, 1], strides = [1, 1]} : vector<8x6xi32> to vector<8x1xi32>
    %6 = vector.broadcast %5 : vector<8x1xi32> to vector<8x48xi32>
    %7 = arith.cmpi eq, %1, %6 : vector<8x48xi32>
    %8 = vector.extract_strided_slice %0 {offsets = [0, 2], sizes = [8, 1], strides = [1, 1]} : vector<8x6xi32> to vector<8x1xi32>
    %c16_i32 = arith.constant 16 : i32
    %9 = vector.broadcast %c16_i32 : i32 to vector<8x1xi32>
    %10 = arith.addi %8, %9 : vector<8x1xi32>
    %11 = vector.broadcast %10 : vector<8x1xi32> to vector<8x48xi32>
    %12 = arith.cmpi eq, %1, %11 : vector<8x48xi32>
    %13 = arith.ori %4, %12 : vector<8x48xi1>
    %14 = vector.extract_strided_slice %0 {offsets = [0, 3], sizes = [8, 1], strides = [1, 1]} : vector<8x6xi32> to vector<8x1xi32>
    %c16_i32_1 = arith.constant 16 : i32
    %15 = vector.broadcast %c16_i32_1 : i32 to vector<8x1xi32>
    %16 = arith.addi %14, %15 : vector<8x1xi32>
    %17 = vector.broadcast %16 : vector<8x1xi32> to vector<8x48xi32>
    %18 = arith.cmpi eq, %1, %17 : vector<8x48xi32>
    %19 = arith.ori %7, %18 : vector<8x48xi1>
    %20 = vector.extract_strided_slice %0 {offsets = [0, 4], sizes = [8, 1], strides = [1, 1]} : vector<8x6xi32> to vector<8x1xi32>
    %c32_i32 = arith.constant 32 : i32
    %21 = vector.broadcast %c32_i32 : i32 to vector<8x1xi32>
    %22 = arith.addi %20, %21 : vector<8x1xi32>
    %23 = vector.broadcast %22 : vector<8x1xi32> to vector<8x48xi32>
    %24 = arith.cmpi eq, %1, %23 : vector<8x48xi32>
    %25 = arith.ori %13, %24 : vector<8x48xi1>
    %26 = vector.extract_strided_slice %0 {offsets = [0, 5], sizes = [8, 1], strides = [1, 1]} : vector<8x6xi32> to vector<8x1xi32>
    %c32_i32_2 = arith.constant 32 : i32
    %27 = vector.broadcast %c32_i32_2 : i32 to vector<8x1xi32>
    %28 = arith.addi %26, %27 : vector<8x1xi32>
    %29 = vector.broadcast %28 : vector<8x1xi32> to vector<8x48xi32>
    %30 = arith.cmpi eq, %1, %29 : vector<8x48xi32>
    %31 = arith.ori %19, %30 : vector<8x48xi1>
    %32 = arith.extui %25 : vector<8x48xi1> to vector<8x48xi32>
    %33 = arith.sitofp %32 : vector<8x48xi32> to vector<8x48xf32>
    %34 = arith.extui %31 : vector<8x48xi1> to vector<8x48xi32>
    %35 = arith.sitofp %34 : vector<8x48xi32> to vector<8x48xf32>
    %c0_3 = arith.constant 0 : index
    %c0_4 = arith.constant 0 : index
    %36 = vector.load %arg2[%c0_3, %c0_4] : memref<48x96xf32, #tpu.memory_space<vmem>>, vector<48x96xf32>
    %cst = arith.constant dense<0.000000e+00> : vector<8x96xf32>
    %37 = tpu.matmul %33, %36, %cst {dimension_numbers = #tpu.dot_dimension_numbers<[1], [0], [0], [1], [0, 0, 1, 1], [], []>} : vector<8x48xf32>, vector<48x96xf32>, vector<8x96xf32> -> vector<8x96xf32>
    %c0_5 = arith.constant 0 : index
    %c0_6 = arith.constant 0 : index
    %38 = vector.load %arg3[%c0_5, %c0_6] : memref<48x96xf32, #tpu.memory_space<vmem>>, vector<48x96xf32>
    %cst_7 = arith.constant dense<0.000000e+00> : vector<8x96xf32>
    %39 = tpu.matmul %35, %38, %cst_7 {dimension_numbers = #tpu.dot_dimension_numbers<[1], [0], [0], [1], [0, 0, 1, 1], [], []>} : vector<8x48xf32>, vector<48x96xf32>, vector<8x96xf32> -> vector<8x96xf32>
    %40 = arith.mulf %37, %39 : vector<8x96xf32>
    %41 = math.tanh %40 : vector<8x96xf32>
    %c0_8 = arith.constant 0 : index
    %c0_9 = arith.constant 0 : index
    %42 = vector.load %arg4[%c0_8, %c0_9] : memref<96x128xf32, #tpu.memory_space<vmem>>, vector<96x128xf32>
    %cst_10 = arith.constant dense<0.000000e+00> : vector<8x128xf32>
    %43 = tpu.matmul %41, %42, %cst_10 {dimension_numbers = #tpu.dot_dimension_numbers<[1], [0], [0], [1], [0, 0, 1, 1], [], []>} : vector<8x96xf32>, vector<96x128xf32>, vector<8x128xf32> -> vector<8x128xf32>
    %c0_11 = arith.constant 0 : index
    %c0_12 = arith.constant 0 : index
    %44 = vector.load %arg5[%c0_11, %c0_12] : memref<1x128xf32, #tpu.memory_space<vmem>>, vector<1x128xf32>
    %45 = vector.broadcast %44 : vector<1x128xf32> to vector<8x128xf32>
    %46 = arith.addf %43, %45 : vector<8x128xf32>
    %c0_13 = arith.constant 0 : index
    %c0_14 = arith.constant 0 : index
    %47 = vector.load %arg6[%c0_13, %c0_14] : memref<8x128xf32, #tpu.memory_space<vmem>>, vector<8x128xf32>
    tpu.vector_store %arg6[%c0_13, %c0_14], %46 {strides = array<i32>} : memref<8x128xf32, #tpu.memory_space<vmem>>, vector<8x128xf32>,
    return
  }
  func.func @transform_0(%arg0: i32) -> (i32, i32) {
    %c0_i32 = arith.constant 0 : i32
    %c0_i32_0 = arith.constant 0 : i32
    return %arg0, %c0_i32 : i32, i32
  }
  func.func @transform_1(%arg0: i32) -> (i32, i32) {
    %c0_i32 = arith.constant 0 : i32
    %c0_i32_0 = arith.constant 0 : i32
    %c0_i32_1 = arith.constant 0 : i32
    return %c0_i32, %c0_i32_0 : i32, i32
  }
  func.func @transform_2(%arg0: i32) -> (i32, i32) {
    %c0_i32 = arith.constant 0 : i32
    %c0_i32_0 = arith.constant 0 : i32
    %c0_i32_1 = arith.constant 0 : i32
    return %c0_i32, %c0_i32_0 : i32, i32
  }
  func.func @transform_3(%arg0: i32) -> (i32, i32) {
    %c0_i32 = arith.constant 0 : i32
    %c0_i32_0 = arith.constant 0 : i32
    %c0_i32_1 = arith.constant 0 : i32
    return %c0_i32, %c0_i32_0 : i32, i32
  }
  func.func @transform_4(%arg0: i32) -> (i32, i32) {
    %c0_i32 = arith.constant 0 : i32
    %c0_i32_0 = arith.constant 0 : i32
    %c0_i32_1 = arith.constant 0 : i32
    return %c0_i32, %c0_i32_0 : i32, i32
  }
  func.func @transform_5(%arg0: i32) -> (i32, i32) {
    %c0_i32 = arith.constant 0 : i32
    %c0_i32_0 = arith.constant 0 : i32
    return %arg0, %c0_i32 : i32, i32
  }
}

</mosaic_0001>

<llo_original>
// kernel: tpu_custom_call.1
$region0: #{tpu_custom_call.1}
  #allocation0 [shape = 'u32[]', space=smem, size = 0x4, offset = 0x4, fixed_abs, tag = 'smem constant byte address 0x4 - core index']
  #allocation1 [shape = 'u32[144,128]{1,0:T(1,128)}', space=vmem, size = 0x12000, scoped, tag = 'internal scratch']
  %s0 = inlined_call_operand.hbm [shape: s32[8,6], index: 0, kind: input, shape index: {}]
  %s1 = inlined_call_operand.hbm [shape: f32[48,96], index: 1, kind: input, shape index: {}]
  %s2 = inlined_call_operand.hbm [shape: f32[48,96], index: 2, kind: input, shape index: {}]
  %s3 = inlined_call_operand.hbm [shape: f32[96,128], index: 3, kind: input, shape index: {}]
  %s4 = inlined_call_operand.vmem [shape: f32[1,128], index: 4, kind: input, shape index: {}]
  %s5 = inlined_call_operand.hbm [shape: f32[8,128], index: 5, kind: output, shape index: {}]
  %s6 = sld [smem:[#allocation0]]
  $region46: #{tpu_custom_call.1} parent=0
    _
  %s8 = ssub.s32 1, %s6
  %s9 = scalar_select 0, %s8, %s6
  $region1: #{tpu_custom_call.1} parent=0
    #allocation2 [shape = 'u8[4096]{0}', space=vmem, size = 0x1000, scoped, tag = 'input window, operand 0, single buffered']
    #allocation3 [shape = 's32[1]{0}', space=sflag, size = 0x4, scoped, tag = 'scoped memory for tpu_custom_call.1']
    #allocation4 [shape = 's32[1]{0}', space=sflag, size = 0x4, scoped, tag = 'scoped memory for tpu_custom_call.1']
    #allocation5 [shape = 'u8[24576]{0}', space=vmem, size = 0x6000, scoped, tag = 'input window, operand 1, single buffered']
    #allocation6 [shape = 's32[1]{0}', space=sflag, size = 0x4, scoped, tag = 'scoped memory for tpu_custom_call.1']
    #allocation7 [shape = 'u8[24576]{0}', space=vmem, size = 0x6000, scoped, tag = 'input window, operand 2, single buffered']
    #allocation8 [shape = 'u8[49152]{0}', space=vmem, size = 0xc000, scoped, tag = 'input window, operand 3, single buffered']
    #allocation9 [shape = 's32[1]{0}', space=sflag, size = 0x4, scoped, tag = 'scoped memory for tpu_custom_call.1']
    #allocation10 [shape = 'u8[4096]{0}', space=vmem, size = 0x1000, scoped, tag = 'output window, operand 0, single buffered']
    %10 = vsyncpa [#allocation3], 0
    %11 = vsyncpa [#allocation6], 0
    %12 = vsyncpa [#allocation9], 0
    %13 = vsyncpa [#allocation4], 0
    // Predicated region
    $region2: #{tpu_custom_call.1} parent=1 // pred_check
      _
    $region3: #{tpu_custom_call.1} parent=1 // pred_check_branch
      %15 = sbr.rel (0) target = $region5
    $region4: #{tpu_custom_call.1} parent=1 // pred_region
      %s17 = ssub.s32 128, 128
      %18 = vsyncadd [#allocation3], %s17
      %s20 = sshll.u32 [#allocation2], 4
      %s21 = int_to_ptr.vmem [resolvable:$true] %s20
      %23 = dma.hbm_to_vmem [thread:$0]  %s0, 128, %s21, [#allocation3]
    $region5: #{tpu_custom_call.1} parent=1 // pred_fallthru
      _
    // Predicated region
    $region6: #{tpu_custom_call.1} parent=1 // pred_check
      _
    $region7: #{tpu_custom_call.1} parent=1 // pred_check_branch
      %25 = sbr.rel (0) target = $region9
    $region8: #{tpu_custom_call.1} parent=1 // pred_region
      %s27 = ssub.s32 768, 768
      %28 = vsyncadd [#allocation6], %s27
      %s29 = sshll.u32 [#allocation5], 4
      %s30 = int_to_ptr.vmem [resolvable:$true] %s29
      %35 = dma.hbm_to_vmem [thread:$0]  %s1, 768, %s30, [#allocation6], 128, 128, 8
    $region9: #{tpu_custom_call.1} parent=1 // pred_fallthru
      _
    // Predicated region
    $region10: #{tpu_custom_call.1} parent=1 // pred_check
      _
    $region11: #{tpu_custom_call.1} parent=1 // pred_check_branch
      %37 = sbr.rel (0) target = $region13
    $region12: #{tpu_custom_call.1} parent=1 // pred_region
      %s39 = ssub.s32 768, 768
      %40 = vsyncadd [#allocation6], %s39
      %s41 = sshll.u32 [#allocation7], 4
      %s42 = int_to_ptr.vmem [resolvable:$true] %s41
      %47 = dma.hbm_to_vmem [thread:$0]  %s2, 768, %s42, [#allocation6], 128, 128, 8
    $region13: #{tpu_custom_call.1} parent=1 // pred_fallthru
      _
    // Predicated region
    $region14: #{tpu_custom_call.1} parent=1 // pred_check
      _
    $region15: #{tpu_custom_call.1} parent=1 // pred_check_branch
      %49 = sbr.rel (0) target = $region17
    $region16: #{tpu_custom_call.1} parent=1 // pred_region
      %s51 = ssub.s32 1536, 1536
      %52 = vsyncadd [#allocation9], %s51
      %s53 = sshll.u32 [#allocation8], 4
      %s54 = int_to_ptr.vmem [resolvable:$true] %s53
      %59 = dma.hbm_to_vmem [thread:$0]  %s3, 1536, %s54, [#allocation9], 128, 128, 8
    $region17: #{tpu_custom_call.1} parent=1 // pred_fallthru
      _
    // Predicated region
    $region18: #{tpu_custom_call.1} parent=1 // pred_check
      _
    $region19: #{tpu_custom_call.1} parent=1 // pred_check_branch
      %61 = sbr.rel (0) target = $region21
    $region20: #{tpu_custom_call.1} parent=1 // pred_region
      _
    $region21: #{tpu_custom_call.1} parent=1 // pred_fallthru
      _
    // Predicated region
    $region22: #{tpu_custom_call.1} parent=1 // pred_check
      _
    $region23: #{tpu_custom_call.1} parent=1 // pred_check_branch
      %63 = sbr.rel (0) target = $region25
    $region24: #{tpu_custom_call.1} parent=1 // pred_region
      %64 = dma.done [#allocation3], 128
    $region25: #{tpu_custom_call.1} parent=1 // pred_fallthru
      _
    // Predicated region
    $region26: #{tpu_custom_call.1} parent=1 // pred_check
      _
    $region27: #{tpu_custom_call.1} parent=1 // pred_check_branch
      %66 = sbr.rel (0) target = $region29
    $region28: #{tpu_custom_call.1} parent=1 // pred_region
      %67 = dma.done [#allocation6], 768
    $region29: #{tpu_custom_call.1} parent=1 // pred_fallthru
      _
    // Predicated region
    $region30: #{tpu_custom_call.1} parent=1 // pred_check
      _
    $region31: #{tpu_custom_call.1} parent=1 // pred_check_branch
      %69 = sbr.rel (0) target = $region33
    $region32: #{tpu_custom_call.1} parent=1 // pred_region
      %70 = dma.done [#allocation6], 768
    $region33: #{tpu_custom_call.1} parent=1 // pred_fallthru
      _
    // Predicated region
    $region34: #{tpu_custom_call.1} parent=1 // pred_check
      _
    $region35: #{tpu_custom_call.1} parent=1 // pred_check_branch
      %72 = sbr.rel (0) target = $region37
    $region36: #{tpu_custom_call.1} parent=1 // pred_region
      %73 = dma.done [#allocation9], 1536
    $region37: #{tpu_custom_call.1} parent=1 // pred_fallthru
      _
    %v74 = vld [vmem:[#allocation2] sm:$0xff]
    %v75 = vlaneseq
    %v76 = vand.u32 %v75, 127
    %77 = vset.pattern.permute.xlu0 0
    %78 = vperm.xlu0 %77, %v74
    %v79 = vpop.permute.xlu0 %78
    %vm80 = vcmp.eq.s32.totalorder %v76, %v79
    %81 = vset.pattern.permute.xlu0 1
    %82 = vperm.xlu0 %81, %v74
    %v83 = vpop.permute.xlu0 %82
    %vm84 = vcmp.eq.s32.totalorder %v76, %v83
    %v85 = vadd.s32 %v74, 16
    %86 = vset.pattern.permute.xlu0 2
    %87 = vperm.xlu0 %86, %v85
    %v88 = vpop.permute.xlu0 %87
    %vm89 = vcmp.eq.s32.totalorder %v76, %v88
    %vm90 = vmor %vm80, %vm89
    %91 = vset.pattern.permute.xlu0 3
    %92 = vperm.xlu0 %91, %v85
    %v93 = vpop.permute.xlu0 %92
    %vm94 = vcmp.eq.s32.totalorder %v76, %v93
    %vm95 = vmor %vm84, %vm94
    %v96 = vadd.s32 %v74, 32
    %97 = vset.pattern.permute.xlu0 4
    %98 = vperm.xlu0 %97, %v96
    %v99 = vpop.permute.xlu0 %98
    %vm100 = vcmp.eq.s32.totalorder %v76, %v99
    %vm101 = vmor %vm90, %vm100
    %102 = vset.pattern.permute.xlu0 5
    %103 = vperm.xlu0 %102, %v96
    %v104 = vpop.permute.xlu0 %103
    %vm105 = vcmp.eq.s32.totalorder %v76, %v104
    %vm106 = vmor %vm95, %vm105
    %v107 = vsel %vm101, 1, 0
    %v108 = vcvt.s32.f32 %v107
    %v109 = vsel %vm106, 1, 0
    %v110 = vcvt.s32.f32 %v109
    %v111 = vld [vmem:[#allocation5] sm:$0xff]
    %v112 = vld [vmem:[#allocation5 + $0x8] sm:$0xff]
    %v113 = vld [vmem:[#allocation5 + $0x10] sm:$0xff]
    %v114 = vld [vmem:[#allocation5 + $0x18] sm:$0xff]
    %v115 = vld [vmem:[#allocation5 + $0x20] sm:$0xff]
    %v116 = vld [vmem:[#allocation5 + $0x28] sm:$0xff]
    %vm117 = vcmask 392192
    %v119 = vsel %vm117, %v108, 0
    %121 = vmatprep.subr.mxu0 0.0
    %122 = vmatpush1.msra.mxu0 %v111
    %123 = vmatprep.subr.mxu0 0.0
    %124 = vmatpush1.msra.mxu0 %v112
    %125 = vmatprep.subr.mxu0 0.0
    %126 = vmatpush1.msra.mxu0 %v113
    %127 = vmatprep.subr.mxu0 0.0
    %128 = vmatpush1.msra.mxu0 %v114
    %129 = vmatprep.subr.mxu0 0.0
    %130 = vmatpush1.msra.mxu0 %v115
    %131 = vmatprep.subr.mxu0 0.0
    %132 = vmatpush1.msra.mxu0 %v116
    %133 = vmatprep.subr.mxu0 0.0
    %134 = vmatpush1.msra.mxu0 0.0
    %135 = vmatprep.subr.mxu0 0.0
    %136 = vmatpush1.msra.mxu0 0.0
    %137 = vmatprep.subr.mxu0 0.0
    %138 = vmatpush1.msra.mxu0 0.0
    %139 = vmatprep.subr.mxu0 0.0
    %140 = vmatpush1.msra.mxu0 0.0
    %141 = vmatprep.subr.mxu0 0.0
    %142 = vmatpush1.msra.mxu0 0.0
    %143 = vmatprep.subr.mxu0 0.0
    %144 = vmatpush1.msra.mxu0 0.0
    %145 = vmatprep.subr.mxu0 0.0
    %146 = vmatpush1.msra.mxu0 0.0
    %147 = vmatprep.subr.mxu0 0.0
    %148 = vmatpush1.msra.mxu0 0.0
    %149 = vmatprep.subr.mxu0 0.0
    %150 = vmatpush1.msra.mxu0 0.0
    %151 = vmatprep.subr.mxu0 0.0
    %152 = vmatpush1.msra.mxu0 0.0
    %153 = vmatprep.subr.mxu0 0.0
    %154 = vmatpush1.msra.mxu0 0.0
    %155 = vmatprep.subr.mxu0 0.0
    %156 = vmatpush1.msra.mxu0 0.0
    %157 = vmatprep.subr.mxu0 0.0
    %158 = vmatpush1.msra.mxu0 0.0
    %159 = vmatprep.subr.mxu0 0.0
    %160 = vmatpush1.msra.mxu0 0.0
    %161 = vmatprep.subr.mxu0 0.0
    %162 = vmatpush1.msra.mxu0 0.0
    %163 = vmatprep.subr.mxu0 0.0
    %164 = vmatpush1.msra.mxu0 0.0
    %165 = vmatprep.subr.mxu0 0.0
    %166 = vmatpush1.msra.mxu0 0.0
    %167 = vmatprep.subr.mxu0 0.0
    %168 = vmatpush1.msra.mxu0 0.0
    %169 = vmatprep.subr.mxu0 0.0
    %170 = vmatpush1.msra.mxu0 0.0
    %171 = vmatprep.subr.mxu0 0.0
    %172 = vmatpush1.msra.mxu0 0.0
    %173 = vmatprep.subr.mxu0 0.0
    %174 = vmatpush1.msra.mxu0 0.0
    %175 = vmatprep.subr.mxu0 0.0
    %176 = vmatpush1.msra.mxu0 0.0
    %177 = vmatprep.subr.mxu0 0.0
    %178 = vmatpush1.msra.mxu0 0.0
    %179 = vmatprep.subr.mxu0 0.0
    %180 = vmatpush1.msra.mxu0 0.0
    %181 = vmatprep.subr.mxu0 0.0
    %182 = vmatpush1.msra.mxu0 0.0
    %183 = vmatprep.subr.mxu0 0.0
    %184 = vmatpush1.msra.mxu0 0.0
    %185 = vmatprep.mubr.f32.mxu0 0.0
    %186 = vmatmul.mubr.f32.gmra.mrb[0].mxu0 %v119
    %v187 = vpop.f32.mrb[0].mxu0
    %v188 = vadd.f32 0.0, %v187
    %v189 = vpop.f32.mrb[0].mxu0
    %190 = vdwg.mxu0
    %v191 = vld [vmem:[#allocation7] sm:$0xff]
    %v192 = vld [vmem:[#allocation7 + $0x8] sm:$0xff]
    %v193 = vld [vmem:[#allocation7 + $0x10] sm:$0xff]
    %v194 = vld [vmem:[#allocation7 + $0x18] sm:$0xff]
    %v195 = vld [vmem:[#allocation7 + $0x20] sm:$0xff]
    %v196 = vld [vmem:[#allocation7 + $0x28] sm:$0xff]
    %v198 = vsel %vm117, %v110, 0
    %200 = vmatprep.subr.mxu0 0.0
    %201 = vmatpush1.msra.mxu0 %v191
    %202 = vmatprep.subr.mxu0 0.0
    %203 = vmatpush1.msra.mxu0 %v192
    %204 = vmatprep.subr.mxu0 0.0
    %205 = vmatpush1.msra.mxu0 %v193
    %206 = vmatprep.subr.mxu0 0.0
    %207 = vmatpush1.msra.mxu0 %v194
    %208 = vmatprep.subr.mxu0 0.0
    %209 = vmatpush1.msra.mxu0 %v195
    %210 = vmatprep.subr.mxu0 0.0
    %211 = vmatpush1.msra.mxu0 %v196
    %212 = vmatprep.subr.mxu0 0.0
    %213 = vmatpush1.msra.mxu0 0.0
    %214 = vmatprep.subr.mxu0 0.0
    %215 = vmatpush1.msra.mxu0 0.0
    %216 = vmatprep.subr.mxu0 0.0
    %217 = vmatpush1.msra.mxu0 0.0
    %218 = vmatprep.subr.mxu0 0.0
    %219 = vmatpush1.msra.mxu0 0.0
    %220 = vmatprep.subr.mxu0 0.0
    %221 = vmatpush1.msra.mxu0 0.0
    %222 = vmatprep.subr.mxu0 0.0
    %223 = vmatpush1.msra.mxu0 0.0
    %224 = vmatprep.subr.mxu0 0.0
    %225 = vmatpush1.msra.mxu0 0.0
    %226 = vmatprep.subr.mxu0 0.0
    %227 = vmatpush1.msra.mxu0 0.0
    %228 = vmatprep.subr.mxu0 0.0
    %229 = vmatpush1.msra.mxu0 0.0
    %230 = vmatprep.subr.mxu0 0.0
    %231 = vmatpush1.msra.mxu0 0.0
    %232 = vmatprep.subr.mxu0 0.0
    %233 = vmatpush1.msra.mxu0 0.0
    %234 = vmatprep.subr.mxu0 0.0
    %235 = vmatpush1.msra.mxu0 0.0
    %236 = vmatprep.subr.mxu0 0.0
    %237 = vmatpush1.msra.mxu0 0.0
    %238 = vmatprep.subr.mxu0 0.0
    %239 = vmatpush1.msra.mxu0 0.0
    %240 = vmatprep.subr.mxu0 0.0
    %241 = vmatpush1.msra.mxu0 0.0
    %242 = vmatprep.subr.mxu0 0.0
    %243 = vmatpush1.msra.mxu0 0.0
    %244 = vmatprep.subr.mxu0 0.0
    %245 = vmatpush1.msra.mxu0 0.0
    %246 = vmatprep.subr.mxu0 0.0
    %247 = vmatpush1.msra.mxu0 0.0
    %248 = vmatprep.subr.mxu0 0.0
    %249 = vmatpush1.msra.mxu0 0.0
    %250 = vmatprep.subr.mxu0 0.0
    %251 = vmatpush1.msra.mxu0 0.0
    %252 = vmatprep.subr.mxu0 0.0
    %253 = vmatpush1.msra.mxu0 0.0
    %254 = vmatprep.subr.mxu0 0.0
    %255 = vmatpush1.msra.mxu0 0.0
    %256 = vmatprep.subr.mxu0 0.0
    %257 = vmatpush1.msra.mxu0 0.0
    %258 = vmatprep.subr.mxu0 0.0
    %259 = vmatpush1.msra.mxu0 0.0
    %260 = vmatprep.subr.mxu0 0.0
    %261 = vmatpush1.msra.mxu0 0.0
    %262 = vmatprep.subr.mxu0 0.0
    %263 = vmatpush1.msra.mxu0 0.0
    %264 = vmatprep.mubr.f32.mxu0 0.0
    %265 = vmatmul.mubr.f32.gmra.mrb[0].mxu0 %v198
    %v266 = vpop.f32.mrb[0].mxu0
    %v267 = vadd.f32 0.0, %v266
    %v268 = vpop.f32.mrb[0].mxu0
    %269 = vdwg.mxu0
    %v270 = vmul.f32 %v188, %v267
    %v271 = vtanh.pop %v270
    %v272 = vld [vmem:[#allocation8] sm:$0xff]
    %v273 = vld [vmem:[#allocation8 + $0x8] sm:$0xff]
    %v274 = vld [vmem:[#allocation8 + $0x10] sm:$0xff]
    %v275 = vld [vmem:[#allocation8 + $0x18] sm:$0xff]
    %v276 = vld [vmem:[#allocation8 + $0x20] sm:$0xff]
    %v277 = vld [vmem:[#allocation8 + $0x28] sm:$0xff]
    %v278 = vld [vmem:[#allocation8 + $0x30] sm:$0xff]
    %v279 = vld [vmem:[#allocation8 + $0x38] sm:$0xff]
    %v280 = vld [vmem:[#allocation8 + $0x40] sm:$0xff]
    %v281 = vld [vmem:[#allocation8 + $0x48] sm:$0xff]
    %v282 = vld [vmem:[#allocation8 + $0x50] sm:$0xff]
    %v283 = vld [vmem:[#allocation8 + $0x58] sm:$0xff]
    %v284 = vld [vmem:[%s4] sm:$0x1]
    %v286 = vlaneseq
    %v287 = vshrl.u32 %v286, 7
    %v288 = vsub.s32 0, %v287
    %v289 = vrot.slane %v284, %v288
    %vm291 = vcmask 785408
    %v293 = vsel %vm291, %v271, 0
    %295 = vmatprep.subr.mxu0 0.0
    %296 = vmatpush1.msra.mxu0 %v272
    %297 = vmatprep.subr.mxu0 0.0
    %298 = vmatpush1.msra.mxu0 %v273
    %299 = vmatprep.subr.mxu0 0.0
    %300 = vmatpush1.msra.mxu0 %v274
    %301 = vmatprep.subr.mxu0 0.0
    %302 = vmatpush1.msra.mxu0 %v275
    %303 = vmatprep.subr.mxu0 0.0
    %304 = vmatpush1.msra.mxu0 %v276
    %305 = vmatprep.subr.mxu0 0.0
    %306 = vmatpush1.msra.mxu0 %v277
    %307 = vmatprep.subr.mxu0 0.0
    %308 = vmatpush1.msra.mxu0 %v278
    %309 = vmatprep.subr.mxu0 0.0
    %310 = vmatpush1.msra.mxu0 %v279
    %311 = vmatprep.subr.mxu0 0.0
    %312 = vmatpush1.msra.mxu0 %v280
    %313 = vmatprep.subr.mxu0 0.0
    %314 = vmatpush1.msra.mxu0 %v281
    %315 = vmatprep.subr.mxu0 0.0
    %316 = vmatpush1.msra.mxu0 %v282
    %317 = vmatprep.subr.mxu0 0.0
    %318 = vmatpush1.msra.mxu0 %v283
    %319 = vmatprep.subr.mxu0 0.0
    %320 = vmatpush1.msra.mxu0 0.0
    %321 = vmatprep.subr.mxu0 0.0
    %322 = vmatpush1.msra.mxu0 0.0
    %323 = vmatprep.subr.mxu0 0.0
    %324 = vmatpush1.msra.mxu0 0.0
    %325 = vmatprep.subr.mxu0 0.0
    %326 = vmatpush1.msra.mxu0 0.0
    %327 = vmatprep.subr.mxu0 0.0
    %328 = vmatpush1.msra.mxu0 0.0
    %329 = vmatprep.subr.mxu0 0.0
    %330 = vmatpush1.msra.mxu0 0.0
    %331 = vmatprep.subr.mxu0 0.0
    %332 = vmatpush1.msra.mxu0 0.0
    %333 = vmatprep.subr.mxu0 0.0
    %334 = vmatpush1.msra.mxu0 0.0
    %335 = vmatprep.subr.mxu0 0.0
    %336 = vmatpush1.msra.mxu0 0.0
    %337 = vmatprep.subr.mxu0 0.0
    %338 = vmatpush1.msra.mxu0 0.0
    %339 = vmatprep.subr.mxu0 0.0
    %340 = vmatpush1.msra.mxu0 0.0
    %341 = vmatprep.subr.mxu0 0.0
    %342 = vmatpush1.msra.mxu0 0.0
    %343 = vmatprep.subr.mxu0 0.0
    %344 = vmatpush1.msra.mxu0 0.0
    %345 = vmatprep.subr.mxu0 0.0
    %346 = vmatpush1.msra.mxu0 0.0
    %347 = vmatprep.subr.mxu0 0.0
    %348 = vmatpush1.msra.mxu0 0.0
    %349 = vmatprep.subr.mxu0 0.0
    %350 = vmatpush1.msra.mxu0 0.0
    %351 = vmatprep.subr.mxu0 0.0
    %352 = vmatpush1.msra.mxu0 0.0
    %353 = vmatprep.subr.mxu0 0.0
    %354 = vmatpush1.msra.mxu0 0.0
    %355 = vmatprep.subr.mxu0 0.0
    %356 = vmatpush1.msra.mxu0 0.0
    %357 = vmatprep.subr.mxu0 0.0
    %358 = vmatpush1.msra.mxu0 0.0
    %359 = vmatprep.mubr.f32.mxu0 0.0
    %360 = vmatmul.mubr.f32.gmra.mrb[0].mxu0 %v293
    %v361 = vpop.f32.mrb[0].mxu0
    %v362 = vadd.f32 %v289, %v361
    %v363 = vpop.f32.mrb[0].mxu0
    %364 = vdwg.mxu0
    %365 = vst [vmem:[#allocation10] sm:$0xff] %v362
    // Predicated region
    $region38: #{tpu_custom_call.1} parent=1 // pred_check
      _
    $region39: #{tpu_custom_call.1} parent=1 // pred_check_branch
      %367 = sbr.rel (0) target = $region41
    $region40: #{tpu_custom_call.1} parent=1 // pred_region
      %s369 = ssub.s32 128, 128
      %370 = vsyncadd [#allocation4], %s369
      %s372 = sshll.u32 [#allocation10], 4
      %s373 = int_to_ptr.vmem [resolvable:$true] %s372
      %375 = dma.vmem_to_hbm [thread:$0]  %s373, 128, %s5, [#allocation4]
    $region41: #{tpu_custom_call.1} parent=1 // pred_fallthru
      _
    // Predicated region
    $region42: #{tpu_custom_call.1} parent=1 // pred_check
      _
    $region43: #{tpu_custom_call.1} parent=1 // pred_check_branch
      %377 = sbr.rel (0) target = $region45
    $region44: #{tpu_custom_call.1} parent=1 // pred_region
      %378 = dma.done [#allocation4], 128
    $region45: #{tpu_custom_call.1} parent=1 // pred_fallthru
      _
    %379 = vsyncpa [#allocation3], 1
    %380 = vsyncpa [#allocation6], 1
    %381 = vsyncpa [#allocation9], 1
    %382 = vsyncpa [#allocation4], 1

</llo_original>
